<compile_context>
chip_gen: v7x
topology: tpu7x:2x2x1
jax: 0.10.0
libtpu: 0.0.40
codegen_flags: <defaults>
</compile_context>

<pallas_src>
import math

import jax
import jax.numpy as jnp
from jax.experimental import pallas as pl
from jax.experimental.pallas import tpu as pltpu


# ---------------------------------------------------------------------------
# Pallas kernel: fused  out = x_tile @ W + b   (f32 accumulate on the MXU)
# ---------------------------------------------------------------------------
def _linear_kernel(x_ref, w_ref, b_ref, o_ref):
    acc = jnp.dot(x_ref[...], w_ref[...], preferred_element_type=jnp.float32)
    o_ref[...] = (acc + b_ref[...]).astype(o_ref.dtype)


def linear_pallas(x, w_kn, b_row, *, tile_m=512):
    """x: (B, K) f32, w_kn: (K, N) f32 (pre-transposed), b_row: (1, N) -> (B, N)."""
    B, K = x.shape
    K2, N = w_kn.shape
    assert K == K2, "in_features mismatch"
    assert b_row.shape == (1, N)

    SUB = 8
    # Cap the M tile so the grid has >=2 steps when the batch allows it
    # (v7x: 2 TensorCores per chip; a grid of 1 idles one of them).
    half_m = -(-((B + 1) // 2) // SUB) * SUB          # round_up(cdiv(B, 2), 8)
    tm = max(SUB, min(tile_m, half_m))
    grid_m = pl.cdiv(B, tm)

    return pl.pallas_call(
        _linear_kernel,
        out_shape=jax.ShapeDtypeStruct((B, N), x.dtype),
        grid=(grid_m,),
        in_specs=[
            # Activations: tiled over M. Last dim = K (full array dim, no pad).
            pl.BlockSpec((tm, K), lambda i: (i, 0)),
            # Weights: resident across the whole grid (K, N are full dims).
            pl.BlockSpec((K, N), lambda i: (0, 0)),
            # Bias row: resident.
            pl.BlockSpec((1, N), lambda i: (0, 0)),
        ],
        out_specs=pl.BlockSpec((tm, N), lambda i: (i, 0)),
        compiler_params=pltpu.CompilerParams(
            dimension_semantics=("parallel",)),
    )(x, w_kn, b_row)


# ---------------------------------------------------------------------------
# Module wrapper: parameters + forward
# ---------------------------------------------------------------------------
def init_fully_connected(key, in_features, label_num):
    """PyTorch-default-like uniform init for nn.Linear(in_features, label_num).

    Returns params already laid out for the kernel:
      w_kn : (in_features, label_num)  -- W.T, MXU-friendly, computed once here
      b_row: (1, label_num)            -- bias as a broadcastable row
    plus the original torch-layout tensors for reference checks.
    """
    bound = 1.0 / math.sqrt(in_features)
    k_w, k_b = jax.random.split(key)
    w = jax.random.uniform(k_w, (label_num, in_features), jnp.float32, -bound, bound)
    b = jax.random.uniform(k_b, (label_num,), jnp.float32, -bound, bound)
    return {
        "weight": w,                 # (N, K) torch layout, kept for reference
        "bias": b,                   # (N,)
        "w_kn": jnp.asarray(w.T),    # (K, N) pre-transposed once at init
        "b_row": b[None, :],         # (1, N)
    }


def fully_connected_forward(params, x):
    return linear_pallas(x, params["w_kn"], params["b_row"])


if __name__ == "__main__":
    key = jax.random.PRNGKey(0)
    k_param, k_x = jax.random.split(key)

    IN_FEATURES = 100     # fixed by the module: nn.Linear(100, label_num)
    LABEL_NUM = 10
    BATCH = 128

    params = init_fully_connected(k_param, IN_FEATURES, LABEL_NUM)
    x = jax.random.normal(k_x, (BATCH, IN_FEATURES), jnp.float32)

    fwd = jax.jit(fully_connected_forward)
    logits = fwd(params, x)
    jax.block_until_ready(logits)

    # Correctness check against a plain-JAX reference of nn.Linear.
    ref = x @ params["weight"].T + params["bias"]
    assert logits.shape == (BATCH, LABEL_NUM)
    assert jnp.allclose(logits, ref, rtol=1e-5, atol=1e-5), (
        float(jnp.max(jnp.abs(logits - ref))))

    print("KERNEL_OK")
</pallas_src>

<mosaic_0001>
module attributes {stable_mosaic.version = 11 : i64} {
  func.func @_linear_kernel(%arg0: i32, %arg1: memref<64x100xf32, #tpu.memory_space<vmem>>, %arg2: memref<100x10xf32, #tpu.memory_space<vmem>>, %arg3: memref<1x10xf32, #tpu.memory_space<vmem>>, %arg4: memref<64x10xf32, #tpu.memory_space<vmem>>) attributes {dimension_semantics = [#tpu.dimension_semantics<parallel>], iteration_bounds = array<i64: 2>, scalar_prefetch = 0 : i64, scratch_operands = 0 : i64, tpu.core_type = #tpu.core_type<tc>, window_params = [{transform_indices = @transform_0, window_bounds = array<i64: 64, 100>}, {pipeline_mode = #tpu.pipeline_mode<synchronous>, transform_indices = @transform_1, window_bounds = array<i64: 100, 10>}, {pipeline_mode = #tpu.pipeline_mode<synchronous>, transform_indices = @transform_2, window_bounds = array<i64: 1, 10>}, {transform_indices = @transform_3, window_bounds = array<i64: 64, 10>}]} {
    %c0 = arith.constant 0 : index
    %c0_0 = arith.constant 0 : index
    %0 = vector.load %arg1[%c0, %c0_0] : memref<64x100xf32, #tpu.memory_space<vmem>>, vector<64x100xf32>
    %c0_1 = arith.constant 0 : index
    %c0_2 = arith.constant 0 : index
    %1 = vector.load %arg2[%c0_1, %c0_2] : memref<100x10xf32, #tpu.memory_space<vmem>>, vector<100x10xf32>
    %cst = arith.constant dense<0.000000e+00> : vector<64x10xf32>
    %2 = tpu.matmul %0, %1, %cst {dimension_numbers = #tpu.dot_dimension_numbers<[1], [0], [0], [1], [0, 0, 1, 1], [], []>} : vector<64x100xf32>, vector<100x10xf32>, vector<64x10xf32> -> vector<64x10xf32>
    %c0_3 = arith.constant 0 : index
    %c0_4 = arith.constant 0 : index
    %3 = vector.load %arg3[%c0_3, %c0_4] : memref<1x10xf32, #tpu.memory_space<vmem>>, vector<1x10xf32>
    %4 = vector.broadcast %3 : vector<1x10xf32> to vector<64x10xf32>
    %5 = arith.addf %2, %4 : vector<64x10xf32>
    %c0_5 = arith.constant 0 : index
    %c0_6 = arith.constant 0 : index
    %6 = vector.load %arg4[%c0_5, %c0_6] : memref<64x10xf32, #tpu.memory_space<vmem>>, vector<64x10xf32>
    tpu.vector_store %arg4[%c0_5, %c0_6], %5 {strides = array<i32>} : memref<64x10xf32, #tpu.memory_space<vmem>>, vector<64x10xf32>,
    return
  }
  func.func @transform_0(%arg0: i32) -> (i32, i32) {
    %c0_i32 = arith.constant 0 : i32
    %c0_i32_0 = arith.constant 0 : i32
    return %arg0, %c0_i32 : i32, i32
  }
  func.func @transform_1(%arg0: i32) -> (i32, i32) {
    %c0_i32 = arith.constant 0 : i32
    %c0_i32_0 = arith.constant 0 : i32
    %c0_i32_1 = arith.constant 0 : i32
    return %c0_i32, %c0_i32_0 : i32, i32
  }
  func.func @transform_2(%arg0: i32) -> (i32, i32) {
    %c0_i32 = arith.constant 0 : i32
    %c0_i32_0 = arith.constant 0 : i32
    %c0_i32_1 = arith.constant 0 : i32
    return %c0_i32, %c0_i32_0 : i32, i32
  }
  func.func @transform_3(%arg0: i32) -> (i32, i32) {
    %c0_i32 = arith.constant 0 : i32
    %c0_i32_0 = arith.constant 0 : i32
    return %arg0, %c0_i32 : i32, i32
  }
}

</mosaic_0001>

<llo_original>
// kernel: fully_connected_forward.1
$region0: #{fully_connected_forward.1}
  #allocation0 [shape = 'u32[]', space=smem, size = 0x4, offset = 0x4, fixed_abs, tag = 'smem constant byte address 0x4 - core index']
  #allocation1 [shape = 'u32[144,128]{1,0:T(1,128)}', space=vmem, size = 0x12000, scoped, tag = 'internal scratch']
  %s0 = inlined_call_operand.vmem [shape: f32[128,100], index: 0, kind: input, shape index: {}]
  %s1 = inlined_call_operand.vmem [shape: f32[100,10], index: 1, kind: input, shape index: {}]
  %s2 = inlined_call_operand.vmem [shape: f32[1,10], index: 2, kind: input, shape index: {}]
  %s3 = inlined_call_operand.vmem [shape: f32[128,10], index: 3, kind: output, shape index: {}]
  %s4 = sld [smem:[#allocation0]]
  $region45: #{fully_connected_forward.1} parent=0
    _
  %s6 = ssub.s32 1, %s4
  %s7 = scalar_select 0, %s6, %s4
  loop: start=0, step=1, limit=4
  $region2: #{fully_connected_forward.1} parent=0 // loop_pre_header
    _
  $region3: #{fully_connected_forward.1} parent=0 // loop_header
    %s9 = sphi 0, %s13
    %p10 = scmp.ge.s32.totalorder %s9, 4
    %s19 = sphi 0, %s21
    %s22 = sphi 0, %s19
    %s23 = sphi 0, %s22
    %s39 = sphi 0, %s23
    %s43 = sphi 0, %s43
    %s45 = sphi 0, %s43
    %s46 = sphi 0, %s45
    %s60 = sphi 0, %s46
    %s64 = sphi 0, %s64
    %s66 = sphi 0, %s64
    %s67 = sphi 0, %s66
    %s81 = sphi 0, %s67
    %s87 = sphi 0, %s89
    %s90 = sphi 0, %s87
    %s91 = sphi 0, %s90
    %s107 = sphi 0, %s91
  $region4: #{fully_connected_forward.1} parent=0 // loop_header_branch
    %12 = sbr.rel (%p10) target = $region8
  $region5: #{fully_connected_forward.1} parent=0 // loop_body
    %s14 = ssub.s32 %s9, 1
    %s15 = ssub.s32 %s9, 2
    %s16 = sadd.s32 %s9, 1
    %s17 = ssub.s32 %s9, %s16
    %p18 = scmp.eq.s32.totalorder %s17, 0
    %s20 = sadd.s32 %s19, 1
    %s21 = scalar_select %p18, %s19, %s20
    %p24 = pneg %p18
    %p25 = scmp.eq.s32.totalorder %s9, 1
    %p26 = por %p24, %p25
    %p27 = scmp.ne.s32.totalorder %s19, %s22
    %p28 = scmp.eq.s32.totalorder %s9, 0
    %p29 = por %p27, %p28
    %p30 = scmp.ne.s32.totalorder %s19, %s22
    %p31 = scmp.eq.s32.totalorder %s14, 1
    %p32 = por %p30, %p31
    %p33 = scmp.ne.s32.totalorder %s22, %s23
    %p34 = scmp.eq.s32.totalorder %s14, 0
    %p35 = por %p33, %p34
    %p36 = scmp.ne.s32.totalorder %s22, %s23
    %p37 = scmp.eq.s32.totalorder %s15, 1
    %p38 = por %p36, %p37
    %p40 = scmp.ne.s32.totalorder %s23, %s39
    %p41 = scmp.eq.s32.totalorder %s15, 0
    %p42 = por %p40, %p41
    %s44 = sadd.s32 %s43, 1
    %p47 = scmp.eq.s32.totalorder %s9, 1
    %p48 = scmp.ne.s32.totalorder %s43, %s45
    %p49 = scmp.eq.s32.totalorder %s9, 0
    %p50 = por %p48, %p49
    %p51 = scmp.ne.s32.totalorder %s43, %s45
    %p52 = scmp.eq.s32.totalorder %s14, 1
    %p53 = por %p51, %p52
    %p54 = scmp.ne.s32.totalorder %s45, %s46
    %p55 = scmp.eq.s32.totalorder %s14, 0
    %p56 = por %p54, %p55
    %p57 = scmp.ne.s32.totalorder %s45, %s46
    %p58 = scmp.eq.s32.totalorder %s15, 1
    %p59 = por %p57, %p58
    %p61 = scmp.ne.s32.totalorder %s46, %s60
    %p62 = scmp.eq.s32.totalorder %s15, 0
    %p63 = por %p61, %p62
    %s65 = sadd.s32 %s64, 1
    %p68 = scmp.eq.s32.totalorder %s9, 1
    %p69 = scmp.ne.s32.totalorder %s64, %s66
    %p70 = scmp.eq.s32.totalorder %s9, 0
    %p71 = por %p69, %p70
    %p72 = scmp.ne.s32.totalorder %s64, %s66
    %p73 = scmp.eq.s32.totalorder %s14, 1
    %p74 = por %p72, %p73
    %p75 = scmp.ne.s32.totalorder %s66, %s67
    %p76 = scmp.eq.s32.totalorder %s14, 0
    %p77 = por %p75, %p76
    %p78 = scmp.ne.s32.totalorder %s66, %s67
    %p79 = scmp.eq.s32.totalorder %s15, 1
    %p80 = por %p78, %p79
    %p82 = scmp.ne.s32.totalorder %s67, %s81
    %p83 = scmp.eq.s32.totalorder %s15, 0
    %p84 = por %p82, %p83
    %s85 = ssub.s32 %s9, %s16
    %p86 = scmp.eq.s32.totalorder %s85, 0
    %s88 = sadd.s32 %s87, 1
    %s89 = scalar_select %p86, %s87, %s88
    %p92 = pneg %p86
    %p93 = scmp.eq.s32.totalorder %s9, 1
    %p94 = por %p92, %p93
    %p95 = scmp.ne.s32.totalorder %s87, %s90
    %p96 = scmp.eq.s32.totalorder %s9, 0
    %p97 = por %p95, %p96
    %p98 = scmp.ne.s32.totalorder %s87, %s90
    %p99 = scmp.eq.s32.totalorder %s14, 1
    %p100 = por %p98, %p99
    %p101 = scmp.ne.s32.totalorder %s90, %s91
    %p102 = scmp.eq.s32.totalorder %s14, 0
    %p103 = por %p101, %p102
    %p104 = scmp.ne.s32.totalorder %s90, %s91
    %p105 = scmp.eq.s32.totalorder %s15, 1
    %p106 = por %p104, %p105
    %p108 = scmp.ne.s32.totalorder %s91, %s107
    %p109 = scmp.eq.s32.totalorder %s15, 0
    %p110 = por %p108, %p109
    %p111 = scmp.le.s32.totalorder 1, %s9
    %p112 = scmp.lt.s32.totalorder %s9, 3
    %p113 = pnand %p111, %p112
    %p114 = pneg %p113
    // Predicated region
    $region9: #{fully_connected_forward.1} parent=5 // pred_check
      _
    $region10: #{fully_connected_forward.1} parent=5 // pred_check_branch
      %116 = sbr.rel (%p113) target = $region12
    $region11: #{fully_connected_forward.1} parent=5 // pred_region
      %s117 = ssub.s32 %s9, 1
      // Predicated region
      $region13: #{fully_connected_forward.1} parent=11 // pred_check
        %p118 = pneg %p56
      $region14: #{fully_connected_forward.1} parent=11 // pred_check_branch
        %120 = sbr.rel (%p118) target = $region16
      $region15: #{fully_connected_forward.1} parent=11 // pred_region
        _
      $region16: #{fully_connected_forward.1} parent=11 // pred_fallthru
        _
      // Predicated region
      $region17: #{fully_connected_forward.1} parent=11 // pred_check
        %p121 = pneg %p77
      $region18: #{fully_connected_forward.1} parent=11 // pred_check_branch
        %123 = sbr.rel (%p121) target = $region20
      $region19: #{fully_connected_forward.1} parent=11 // pred_region
        _
      $region20: #{fully_connected_forward.1} parent=11 // pred_fallthru
        _
    $region12: #{fully_connected_forward.1} parent=5 // pred_fallthru
      _
    %p124 = scmp.lt.s32.totalorder %s9, 2
    // Predicated region
    $region21: #{fully_connected_forward.1} parent=5 // pred_check
      %p125 = pneg %p124
    $region22: #{fully_connected_forward.1} parent=5 // pred_check_branch
      %127 = sbr.rel (%p125) target = $region24
    $region23: #{fully_connected_forward.1} parent=5 // pred_region
      // Predicated region
      $region25: #{fully_connected_forward.1} parent=23 // pred_check
        %p128 = pneg %p29
      $region26: #{fully_connected_forward.1} parent=23 // pred_check_branch
        %130 = sbr.rel (%p128) target = $region28
      $region27: #{fully_connected_forward.1} parent=23 // pred_region
        %s131 = smul.u32 8, %s9
        %p132 = scmp.lt.s32.totalorder %s131, 15
        %s133 = scalar_select %p132, %s131, 15
        %s134 = smul.addr %s133, 8
        %s135 = scalar_lea.vmem %s0, %s134
        %s136 = smul.u32 8, %s9
      $region28: #{fully_connected_forward.1} parent=23 // pred_fallthru
        _
    $region24: #{fully_connected_forward.1} parent=5 // pred_fallthru
      _
    %p137 = scmp.le.s32.totalorder 1, %s9
    %p138 = scmp.lt.s32.totalorder %s9, 3
    %p139 = pnand %p137, %p138
    %p140 = pneg %p139
    // Predicated region
    $region29: #{fully_connected_forward.1} parent=5 // pred_check
      _
    $region30: #{fully_connected_forward.1} parent=5 // pred_check_branch
      %142 = sbr.rel (%p139) target = $region32
    $region31: #{fully_connected_forward.1} parent=5 // pred_region
      %s143 = ssub.s32 %s9, 1
      %s144 = smul.u32 8, %s14
      %p145 = scmp.lt.s32.totalorder %s144, 15
      %s146 = scalar_select %p145, %s144, 15
      %s147 = smul.addr %s146, 8
      %s148 = scalar_lea.vmem %s0, %s147
      %p149 = pneg %p35
      %p150 = pneg %p32
      %p151 = pneg %p56
      %p152 = pneg %p53
      %p153 = pneg %p77
      %p154 = pneg %p74
      %p155 = pneg %p103
      %p156 = pneg %p100
      %s157 = smul.u32 8, %s14
      %p158 = scmp.lt.s32.totalorder %s157, 15
      %s159 = scalar_select %p158, %s157, 15
      %s160 = smul.addr %s159, 8
      %s161 = scalar_lea.vmem %s3, %s160
      %s162 = smul.u32 8, %s14
      %p163 = scmp.lt.s32.totalorder %s162, 15
      %s164 = scalar_select %p163, %s162, 15
      %s165 = smul.addr %s164, 8
      %s166 = scalar_lea.vmem %s0, %s165
      %s167 = smul.u32 8, %s14
      %s168 = smul.u32 8, %s14
      %p169 = scmp.lt.s32.totalorder %s168, 15
      %s170 = scalar_select %p169, %s168, 15
      %s171 = smul.addr %s170, 8
      %s172 = scalar_lea.vmem %s3, %s171
      %s173 = smul.u32 8, %s14
      %v174 = vld [vmem:[%s166] sm:$0xff]
      %v175 = vld [vmem:[%s166 + $0x8] sm:$0xff]
      %v176 = vld [vmem:[%s166 + $0x10] sm:$0xff]
      %v177 = vld [vmem:[%s166 + $0x18] sm:$0xff]
      %v178 = vld [vmem:[%s166 + $0x20] sm:$0xff]
      %v179 = vld [vmem:[%s166 + $0x28] sm:$0xff]
      %v180 = vld [vmem:[%s166 + $0x30] sm:$0xff]
      %v181 = vld [vmem:[%s166 + $0x38] sm:$0xff]
      %v182 = vld [vmem:[%s1] sm:$0xff]
      %v183 = vld [vmem:[%s1 + $0x8] sm:$0xff]
      %v184 = vld [vmem:[%s1 + $0x10] sm:$0xff]
      %v185 = vld [vmem:[%s1 + $0x18] sm:$0xff]
      %v186 = vld [vmem:[%s1 + $0x20] sm:$0xff]
      %v187 = vld [vmem:[%s1 + $0x28] sm:$0xff]
      %v188 = vld [vmem:[%s1 + $0x30] sm:$0xff]
      %v189 = vld [vmem:[%s1 + $0x38] sm:$0xff]
      %v190 = vld [vmem:[%s1 + $0x40] sm:$0xff]
      %v191 = vld [vmem:[%s1 + $0x48] sm:$0xff]
      %v192 = vld [vmem:[%s1 + $0x50] sm:$0xff]
      %v193 = vld [vmem:[%s1 + $0x58] sm:$0xff]
      %v194 = vld [vmem:[%s1 + $0x60] sm:$0xf]
      %v195 = vld [vmem:[%s2] sm:$0x1]
      %v197 = vlaneseq
      %v198 = vshrl.u32 %v197, 7
      %v199 = vsub.s32 0, %v198
      %v200 = vrot.slane %v195, %v199
      %vm202 = vcmask 818176
      %v204 = vsel %vm202, %v174, 0
      %v207 = vsel %vm202, %v175, 0
      %v210 = vsel %vm202, %v176, 0
      %v213 = vsel %vm202, %v177, 0
      %v216 = vsel %vm202, %v178, 0
      %v219 = vsel %vm202, %v179, 0
      %v222 = vsel %vm202, %v180, 0
      %v225 = vsel %vm202, %v181, 0
      %vm227 = vcmask 1043456
      %v229 = vsel %vm227, %v194, 0
      %231 = vmatprep.subr.mxu0 0.0
      %232 = vmatpush1.msra.mxu0 %v182
      %233 = vmatprep.subr.mxu0 0.0
      %234 = vmatpush1.msra.mxu0 %v183
      %235 = vmatprep.subr.mxu0 0.0
      %236 = vmatpush1.msra.mxu0 %v184
      %237 = vmatprep.subr.mxu0 0.0
      %238 = vmatpush1.msra.mxu0 %v185
      %239 = vmatprep.subr.mxu0 0.0
      %240 = vmatpush1.msra.mxu0 %v186
      %241 = vmatprep.subr.mxu0 0.0
      %242 = vmatpush1.msra.mxu0 %v187
      %243 = vmatprep.subr.mxu0 0.0
      %244 = vmatpush1.msra.mxu0 %v188
      %245 = vmatprep.subr.mxu0 0.0
      %246 = vmatpush1.msra.mxu0 %v189
      %247 = vmatprep.subr.mxu0 0.0
      %248 = vmatpush1.msra.mxu0 %v190
      %249 = vmatprep.subr.mxu0 0.0
      %250 = vmatpush1.msra.mxu0 %v191
      %251 = vmatprep.subr.mxu0 0.0
      %252 = vmatpush1.msra.mxu0 %v192
      %253 = vmatprep.subr.mxu0 0.0
      %254 = vmatpush1.msra.mxu0 %v193
      %255 = vmatprep.subr.mxu0 0.0
      %256 = vmatpush1.msra.mxu0 %v229
      %257 = vmatprep.subr.mxu0 0.0
      %258 = vmatpush1.msra.mxu0 0.0
      %259 = vmatprep.subr.mxu0 0.0
      %260 = vmatpush1.msra.mxu0 0.0
      %261 = vmatprep.subr.mxu0 0.0
      %262 = vmatpush1.msra.mxu0 0.0
      %263 = vmatprep.subr.mxu0 0.0
      %264 = vmatpush1.msra.mxu0 0.0
      %265 = vmatprep.subr.mxu0 0.0
      %266 = vmatpush1.msra.mxu0 0.0
      %267 = vmatprep.subr.mxu0 0.0
      %268 = vmatpush1.msra.mxu0 0.0
      %269 = vmatprep.subr.mxu0 0.0
      %270 = vmatpush1.msra.mxu0 0.0
      %271 = vmatprep.subr.mxu0 0.0
      %272 = vmatpush1.msra.mxu0 0.0
      %273 = vmatprep.subr.mxu0 0.0
      %274 = vmatpush1.msra.mxu0 0.0
      %275 = vmatprep.subr.mxu0 0.0
      %276 = vmatpush1.msra.mxu0 0.0
      %277 = vmatprep.subr.mxu0 0.0
      %278 = vmatpush1.msra.mxu0 0.0
      %279 = vmatprep.subr.mxu0 0.0
      %280 = vmatpush1.msra.mxu0 0.0
      %281 = vmatprep.subr.mxu0 0.0
      %282 = vmatpush1.msra.mxu0 0.0
      %283 = vmatprep.subr.mxu0 0.0
      %284 = vmatpush1.msra.mxu0 0.0
      %285 = vmatprep.subr.mxu0 0.0
      %286 = vmatpush1.msra.mxu0 0.0
      %287 = vmatprep.subr.mxu0 0.0
      %288 = vmatpush1.msra.mxu0 0.0
      %289 = vmatprep.subr.mxu0 0.0
      %290 = vmatpush1.msra.mxu0 0.0
      %291 = vmatprep.subr.mxu0 0.0
      %292 = vmatpush1.msra.mxu0 0.0
      %293 = vmatprep.subr.mxu0 0.0
      %294 = vmatpush1.msra.mxu0 0.0
      %295 = vmatprep.mubr.f32.mxu0 0.0
      %296 = vmatmul.mubr.f32.gmra.mrb[0].mxu0 %v204
      %v297 = vpop.f32.mrb[0].mxu0
      %v298 = vadd.f32 %v200, %v297
      %v299 = vpop.f32.mrb[0].mxu0
      %300 = vmatprep.mubr.f32.mxu0 0.0
      %301 = vmatmul.mubr.f32.gmra.mrb[0].mxu0 %v207
      %v302 = vpop.f32.mrb[0].mxu0
      %v303 = vadd.f32 %v200, %v302
      %v304 = vpop.f32.mrb[0].mxu0
      %305 = vmatprep.mubr.f32.mxu0 0.0
      %306 = vmatmul.mubr.f32.gmra.mrb[0].mxu0 %v210
      %v307 = vpop.f32.mrb[0].mxu0
      %v308 = vadd.f32 %v200, %v307
      %v309 = vpop.f32.mrb[0].mxu0
      %310 = vmatprep.mubr.f32.mxu0 0.0
      %311 = vmatmul.mubr.f32.gmra.mrb[0].mxu0 %v213
      %v312 = vpop.f32.mrb[0].mxu0
      %v313 = vadd.f32 %v200, %v312
      %v314 = vpop.f32.mrb[0].mxu0
      %315 = vmatprep.mubr.f32.mxu0 0.0
      %316 = vmatmul.mubr.f32.gmra.mrb[0].mxu0 %v216
      %v317 = vpop.f32.mrb[0].mxu0
      %v318 = vadd.f32 %v200, %v317
      %v319 = vpop.f32.mrb[0].mxu0
      %320 = vmatprep.mubr.f32.mxu0 0.0
      %321 = vmatmul.mubr.f32.gmra.mrb[0].mxu0 %v219
      %v322 = vpop.f32.mrb[0].mxu0
      %v323 = vadd.f32 %v200, %v322
      %v324 = vpop.f32.mrb[0].mxu0
      %325 = vmatprep.mubr.f32.mxu0 0.0
      %326 = vmatmul.mubr.f32.gmra.mrb[0].mxu0 %v222
      %v327 = vpop.f32.mrb[0].mxu0
      %v328 = vadd.f32 %v200, %v327
      %v329 = vpop.f32.mrb[0].mxu0
      %330 = vmatprep.mubr.f32.mxu0 0.0
      %331 = vmatmul.mubr.f32.gmra.mrb[0].mxu0 %v225
      %v332 = vpop.f32.mrb[0].mxu0
      %v333 = vadd.f32 %v200, %v332
      %v334 = vpop.f32.mrb[0].mxu0
      %335 = vdwg.mxu0
      %vm336 = vcmask 80896
      %337 = vst.msk [vmem:[%s172] sm:$0xff] %vm336, %v298
      %338 = vst.msk [vmem:[%s172 + $0x8] sm:$0xff] %vm336, %v303
      %339 = vst.msk [vmem:[%s172 + $0x10] sm:$0xff] %vm336, %v308
      %340 = vst.msk [vmem:[%s172 + $0x18] sm:$0xff] %vm336, %v313
      %341 = vst.msk [vmem:[%s172 + $0x20] sm:$0xff] %vm336, %v318
      %342 = vst.msk [vmem:[%s172 + $0x28] sm:$0xff] %vm336, %v323
      %343 = vst.msk [vmem:[%s172 + $0x30] sm:$0xff] %vm336, %v328
      %344 = vst.msk [vmem:[%s172 + $0x38] sm:$0xff] %vm336, %v333
      %s345 = smul.u32 8, %s14
      %p346 = scmp.lt.s32.totalorder %s345, 15
      %s347 = scalar_select %p346, %s345, 15
      %s348 = smul.addr %s347, 8
      %s349 = scalar_lea.vmem %s3, %s348
      // Predicated region
      $region33: #{fully_connected_forward.1} parent=31 // pred_check
        %p350 = pneg %p100
      $region34: #{fully_connected_forward.1} parent=31 // pred_check_branch
        %352 = sbr.rel (%p350) target = $region36
      $region35: #{fully_connected_forward.1} parent=31 // pred_region
        %s353 = smul.u32 8, %s14
      $region36: #{fully_connected_forward.1} parent=31 // pred_fallthru
        _
    $region32: #{fully_connected_forward.1} parent=5 // pred_fallthru
      _
    %p354 = scmp.le.s32.totalorder 2, %s9
    // Predicated region
    $region37: #{fully_connected_forward.1} parent=5 // pred_check
      %p355 = pneg %p354
    $region38: #{fully_connected_forward.1} parent=5 // pred_check_branch
      %357 = sbr.rel (%p355) target = $region40
    $region39: #{fully_connected_forward.1} parent=5 // pred_region
      %s358 = ssub.s32 %s9, 2
      // Predicated region
      $region41: #{fully_connected_forward.1} parent=39 // pred_check
        %p359 = pneg %p106
      $region42: #{fully_connected_forward.1} parent=39 // pred_check_branch
        %361 = sbr.rel (%p359) target = $region44
      $region43: #{fully_connected_forward.1} parent=39 // pred_region
        %s362 = smul.u32 8, %s15
        %p363 = scmp.lt.s32.totalorder %s362, 15
        %s364 = scalar_select %p363, %s362, 15
        %s365 = smul.addr %s364, 8
        %s366 = scalar_lea.vmem %s3, %s365
      $region44: #{fully_connected_forward.1} parent=39 // pred_fallthru
        _
    $region40: #{fully_connected_forward.1} parent=5 // pred_fallthru
      _
  $region6: #{fully_connected_forward.1} parent=0 // loop_footer
    %s13 = sadd.s32 1, %s9
  $region7: #{fully_connected_forward.1} parent=0 // loop_footer_branch
    %8 = sbr.rel target = $region3
  $region8: #{fully_connected_forward.1} parent=0 // loop_exit
    _

</llo_original>
